<compile_context>
chip_gen: v6e
topology: v6e:2x2x1
jax: 0.10.0
libtpu: 0.0.40
codegen_flags: <defaults>
</compile_context>

<pallas_src>
import jax
import jax.numpy as jnp
from jax.experimental import pallas as pl
from jax.experimental.pallas import tpu as pltpu


def _round_up(n, m):
    return ((n + m - 1) // m) * m


def _quant_math(x, lF, uF, scale, qmax):
    """Exact forward math of FeatureQuantizer (inference path), f32 compute."""
    x = jnp.clip((x - lF) / (uF - lF), 0.0, 1.0)
    x = jnp.round(x * qmax) / qmax            # half-to-even, matches torch.round
    return x * scale


def _feature_quant_kernel(s_ref, x_ref, o_ref):
    # s_ref: f32[4] in SMEM = [lF, uF, output_scale, num_levels - 1]
    lF, uF, scale, qmax = s_ref[0], s_ref[1], s_ref[2], s_ref[3]
    x = x_ref[...].astype(jnp.float32)
    o_ref[...] = _quant_math(x, lF, uF, scale, qmax).astype(o_ref.dtype)


def _run_pallas(x2d, scalars, *, target_block_bytes=4 * 1024 * 1024):
    rows, lane = x2d.shape
    itemsize = jnp.dtype(x2d.dtype).itemsize
    sub = max(8, 32 // itemsize)              # sublane packing: 8 f32 / 16 bf16 / 32 int8

    # ~4 MiB native-dtype blocks (scaled automatically for sub-32-bit dtypes).
    block_rows = max(sub, target_block_bytes // (lane * itemsize))
    if rows >= 2 * sub:
        # Keep >= 2 grid steps so ("parallel",) can use both v7x TensorCores.
        block_rows = min(block_rows, _round_up(pl.cdiv(rows, 2), sub))
    if block_rows >= rows:
        block_rows = rows                     # single full-extent block
    grid = (pl.cdiv(rows, block_rows),)

    total = rows * lane
    cost = pl.CostEstimate(flops=6 * total, transcendentals=0,
                           bytes_accessed=2 * total * itemsize)

    return pl.pallas_call(
        _feature_quant_kernel,
        out_shape=jax.ShapeDtypeStruct((rows, lane), x2d.dtype),
        grid=grid,
        in_specs=[
            pl.BlockSpec(memory_space=pltpu.MemorySpace.SMEM),   # quant scalars
            pl.BlockSpec((block_rows, lane), lambda i: (i, 0)),  # activation tile
        ],
        out_specs=pl.BlockSpec((block_rows, lane), lambda i: (i, 0)),
        input_output_aliases={1: 0},          # reuse the activation HBM buffer
        cost_estimate=cost,
        compiler_params=pltpu.CompilerParams(
            dimension_semantics=("parallel",),
            # in+out double-buffered ~4 MiB blocks ~= 16 MiB: above v5e's
            # 16 MiB scoped default, comfortably inside every gen's VMEM.
            vmem_limit_bytes=40 * 1024 * 1024,
        ),
    )(scalars, x2d)


def feature_quantizer_forward(x, lF, uF, output_scale, num_levels):
    """Pallas implementation of FeatureQuantizer.forward (inference path)."""
    if num_levels < 2:
        raise ValueError("num_levels must be >= 2 (qmax would be 0).")
    orig_shape = x.shape
    total = x.size

    # Learnable scalars stay on device: no float() -> no host sync, no recompile
    # when lF / uF / output_scale change or are traced.
    scalars = jnp.stack([
        jnp.asarray(lF, jnp.float32).reshape(()),
        jnp.asarray(uF, jnp.float32).reshape(()),
        jnp.asarray(output_scale, jnp.float32).reshape(()),
        jnp.asarray(float(num_levels - 1), jnp.float32).reshape(()),
    ])

    flat = x.reshape(-1)

    # Lane-dense layout: widest lane count that divides the element count.
    lane = next((c for c in (1024, 512, 256, 128) if total % c == 0), None)
    if lane is not None:
        out2d = _run_pallas(flat.reshape(total // lane, lane), scalars)
        return out2d.reshape(orig_shape)

    # Irregular total: kernel on the 128-aligned bulk, plain jnp on the <128
    # element tail.  Avoids padding + re-slicing the whole tensor in HBM.
    lF_f, uF_f, sc_f, qmax_f = scalars[0], scalars[1], scalars[2], scalars[3]
    main = (total // 128) * 128
    if main == 0:
        tail = _quant_math(flat.astype(jnp.float32), lF_f, uF_f, sc_f, qmax_f)
        return tail.astype(x.dtype).reshape(orig_shape)
    head = _run_pallas(flat[:main].reshape(main // 128, 128), scalars).reshape(-1)
    tail = _quant_math(flat[main:].astype(jnp.float32), lF_f, uF_f, sc_f,
                       qmax_f).astype(x.dtype)
    return jnp.concatenate([head, tail]).reshape(orig_shape)


if __name__ == "__main__":
    # Parameter init mirroring FeatureQuantizer.__init__:
    #   uF = 1.0, lF = 0.0, output_scale = 1.0
    # scaling_factor only affects the EWGS backward pass (unused in forward).
    num_levels = 4                      # e.g. 2-bit feature quantization
    lF = jnp.float32(0.0)
    uF = jnp.float32(1.0)
    output_scale = jnp.float32(1.0)

    key = jax.random.PRNGKey(0)
    cases = [
        (2, 4, 16, 16),   # NCHW feature map, total divisible by 1024 (single block)
        (8, 8, 16, 16),   # larger map -> multi-step grid (exercises "parallel")
        (3, 5, 7, 11),    # irregular total -> 128-aligned bulk + jnp tail path
    ]

    ok = True
    for shape in cases:
        key, sub = jax.random.split(key)
        x = jax.random.normal(sub, shape, dtype=jnp.float32)

        # Plain-JAX reference of the forward semantics (computed before the
        # kernel call, so the aliased output cannot perturb the check).
        xr = jnp.clip((x - lF) / (uF - lF), 0.0, 1.0)
        xr = jnp.round(xr * (num_levels - 1)) / (num_levels - 1)
        yr = xr * output_scale

        y = feature_quantizer_forward(x, lF, uF, output_scale, num_levels)
        y = jax.block_until_ready(y)

        ok &= (y.shape == x.shape and y.dtype == x.dtype
               and bool(jnp.allclose(y, yr, atol=1e-6)))

    assert ok, "mismatch vs reference"
    print("KERNEL_OK")
</pallas_src>

<mosaic_0001>
module attributes {stable_mosaic.version = 11 : i64} {
  func.func @_feature_quant_kernel(%arg0: i32, %arg1: memref<4xf32, #tpu.memory_space<smem>>, %arg2: memref<2x1024xf32, #tpu.memory_space<vmem>>, %arg3: memref<2x1024xf32, #tpu.memory_space<vmem>>) attributes {dimension_semantics = [#tpu.dimension_semantics<parallel>], iteration_bounds = array<i64: 1>, scalar_prefetch = 0 : i64, scratch_operands = 0 : i64, tpu.core_type = #tpu.core_type<tc>, window_params = [{transform_indices = @transform_0, window_bounds = array<i64: 4>}, {transform_indices = @transform_1, window_bounds = array<i64: 2, 1024>}, {transform_indices = @transform_2, window_bounds = array<i64: 2, 1024>}]} {
    %c0 = arith.constant 0 : index
    %0 = memref.load %arg1[%c0] : memref<4xf32, #tpu.memory_space<smem>>
    %c1 = arith.constant 1 : index
    %1 = memref.load %arg1[%c1] : memref<4xf32, #tpu.memory_space<smem>>
    %c2 = arith.constant 2 : index
    %2 = memref.load %arg1[%c2] : memref<4xf32, #tpu.memory_space<smem>>
    %c3 = arith.constant 3 : index
    %3 = memref.load %arg1[%c3] : memref<4xf32, #tpu.memory_space<smem>>
    %c0_0 = arith.constant 0 : index
    %c0_1 = arith.constant 0 : index
    %4 = vector.load %arg2[%c0_0, %c0_1] : memref<2x1024xf32, #tpu.memory_space<vmem>>, vector<2x1024xf32>
    %5 = vector.broadcast %0 : f32 to vector<2x1024xf32>
    %6 = arith.subf %4, %5 : vector<2x1024xf32>
    %7 = arith.subf %1, %0 : f32
    %8 = vector.broadcast %7 : f32 to vector<2x1024xf32>
    %9 = arith.divf %6, %8 : vector<2x1024xf32>
    %cst = arith.constant 0.000000e+00 : f32
    %cst_2 = arith.constant 1.000000e+00 : f32
    %10 = vector.broadcast %cst : f32 to vector<2x1024xf32>
    %11 = arith.maximumf %10, %9 : vector<2x1024xf32>
    %12 = vector.broadcast %cst_2 : f32 to vector<2x1024xf32>
    %13 = arith.minimumf %12, %11 : vector<2x1024xf32>
    %14 = vector.broadcast %3 : f32 to vector<2x1024xf32>
    %15 = arith.mulf %13, %14 : vector<2x1024xf32>
    %16 = math.roundeven %15 : vector<2x1024xf32>
    %17 = vector.broadcast %3 : f32 to vector<2x1024xf32>
    %18 = arith.divf %16, %17 : vector<2x1024xf32>
    %19 = vector.broadcast %2 : f32 to vector<2x1024xf32>
    %20 = arith.mulf %18, %19 : vector<2x1024xf32>
    %c0_3 = arith.constant 0 : index
    %c0_4 = arith.constant 0 : index
    %21 = vector.load %arg3[%c0_3, %c0_4] : memref<2x1024xf32, #tpu.memory_space<vmem>>, vector<2x1024xf32>
    tpu.vector_store %arg3[%c0_3, %c0_4], %20 {strides = array<i32>} : memref<2x1024xf32, #tpu.memory_space<vmem>>, vector<2x1024xf32>,
    return
  }
  func.func @transform_0(%arg0: i32) -> i32 {
    %c0_i32 = arith.constant 0 : i32
    %c0_i32_0 = arith.constant 0 : i32
    return %c0_i32 : i32
  }
  func.func @transform_1(%arg0: i32) -> (i32, i32) {
    %c0_i32 = arith.constant 0 : i32
    %c0_i32_0 = arith.constant 0 : i32
    return %arg0, %c0_i32 : i32, i32
  }
  func.func @transform_2(%arg0: i32) -> (i32, i32) {
    %c0_i32 = arith.constant 0 : i32
    %c0_i32_0 = arith.constant 0 : i32
    return %arg0, %c0_i32 : i32, i32
  }
}

</mosaic_0001>

<llo_original>
// kernel: tpu_custom_call.1
$region0: #{tpu_custom_call.1}
  #allocation0 [shape = 'u32[]', space=smem, size = 0x4, offset = 0x4, fixed_abs, tag = 'smem constant byte address 0x4 - core index']
  #allocation1 [shape = 'u32[144,128]{1,0:T(1,128)}', space=vmem, size = 0x12000, scoped, tag = 'internal scratch']
  %s0 = inlined_call_operand.vmem [shape: f32[4], index: 0, kind: input, shape index: {}]
  %s1 = inlined_call_operand.hbm [shape: f32[2,1024], index: 1, kind: input, shape index: {}, may-alias: {1,2}]
  %s2 = inlined_call_operand.hbm [shape: f32[2,1024], index: 2, kind: output, shape index: {}, may-alias: {1,2}]
  %s3 = sld [smem:[#allocation0]]
  $region26: #{tpu_custom_call.1} parent=0
    _
  %s5 = ssub.s32 1, %s3
  %s6 = scalar_select 0, %s5, %s3
  $region1: #{tpu_custom_call.1} parent=0
    #allocation2 [shape = 'u8[512]{0}', space=smem, size = 0x200, scoped, tag = 'input window, operand 0, single buffered']
    #allocation3 [shape = 's32[1]{0}', space=sflag, size = 0x4, scoped, tag = 'scoped memory for tpu_custom_call.1']
    #allocation4 [shape = 's32[1]{0}', space=sflag, size = 0x4, scoped, tag = 'scoped memory for tpu_custom_call.1']
    #allocation5 [shape = 's32[1]{0}', space=sflag, size = 0x4, scoped, tag = 'scoped memory for tpu_custom_call.1']
    #allocation6 [shape = 'u8[8192]{0}', space=vmem, size = 0x2000, scoped, tag = 'input window, operand 1, single buffered']
    #allocation7 [shape = 'u8[8192]{0}', space=vmem, size = 0x2000, scoped, tag = 'output window, operand 0, single buffered']
    %7 = vsyncpa [#allocation5], 0
    %8 = vsyncpa [#allocation3], 0
    %9 = vsyncpa [#allocation4], 0
    // Predicated region
    $region2: #{tpu_custom_call.1} parent=1 // pred_check
      _
    $region3: #{tpu_custom_call.1} parent=1 // pred_check_branch
      %11 = sbr.rel (0) target = $region5
    $region4: #{tpu_custom_call.1} parent=1 // pred_region
      %s13 = ssub.s32 16, 16
      %14 = vsyncadd [#allocation5], %s13
      %s16 = sshll.u32 %s0, 4
      %s17 = int_to_ptr.vmem [resolvable:$true] %s16
      %19 = dma.vmem_to_smem %s17, 16, [#allocation2], [#allocation5]
    $region5: #{tpu_custom_call.1} parent=1 // pred_fallthru
      _
    // Predicated region
    $region6: #{tpu_custom_call.1} parent=1 // pred_check
      _
    $region7: #{tpu_custom_call.1} parent=1 // pred_check_branch
      %21 = sbr.rel (0) target = $region9
    $region8: #{tpu_custom_call.1} parent=1 // pred_region
      %s23 = ssub.s32 256, 256
      %24 = vsyncadd [#allocation3], %s23
      %s26 = sshll.u32 [#allocation6], 4
      %s27 = int_to_ptr.vmem [resolvable:$true] %s26
      %29 = dma.hbm_to_vmem [thread:$0]  %s1, 256, %s27, [#allocation3]
    $region9: #{tpu_custom_call.1} parent=1 // pred_fallthru
      _
    // Predicated region
    $region10: #{tpu_custom_call.1} parent=1 // pred_check
      _
    $region11: #{tpu_custom_call.1} parent=1 // pred_check_branch
      %31 = sbr.rel (0) target = $region13
    $region12: #{tpu_custom_call.1} parent=1 // pred_region
      %32 = dma.done [#allocation5], 16
    $region13: #{tpu_custom_call.1} parent=1 // pred_fallthru
      _
    // Predicated region
    $region14: #{tpu_custom_call.1} parent=1 // pred_check
      _
    $region15: #{tpu_custom_call.1} parent=1 // pred_check_branch
      %34 = sbr.rel (0) target = $region17
    $region16: #{tpu_custom_call.1} parent=1 // pred_region
      %35 = dma.done [#allocation3], 256
    $region17: #{tpu_custom_call.1} parent=1 // pred_fallthru
      _
    %36 = sfence
    %s37 = sld [smem:[#allocation2]]
    %s38 = sld [smem:[#allocation2 + $0x1]]
    %s39 = sld [smem:[#allocation2 + $0x2]]
    %s40 = sld [smem:[#allocation2 + $0x3]]
    %v41 = vld [vmem:[#allocation6] sm:$0xff]
    %v42 = vld [vmem:[#allocation6 + $0x8] sm:$0xff]
    %v43 = vstv %s37
    %v44 = vsub.f32 %v41, %v43
    %v45 = vsub.f32 %v42, %v43
    %s46 = ssub.f32 %s38, %s37
    %v47 = vstv %s46
    %v48 = vrcp.pop %v47
    %v49 = vmul.f32 %v44, %v48
    %v50 = vmul.f32 %v45, %v48
    %v51 = vmax.f32 %v49, 0.0
    %v52 = vmax.f32 %v50, 0.0
    %v53 = vmin.f32 %v51, 1.0
    %v54 = vmin.f32 %v52, 1.0
    %v55 = vstv %s40
    %v56 = vmul.f32 %v53, %v55
    %v57 = vmul.f32 %v54, %v55
    %v58 = vround.ne.pseudo %v56
    %v59 = vround.ne.pseudo %v57
    %v60 = vrcp.pop %v55
    %v61 = vmul.f32 %v58, %v60
    %v62 = vmul.f32 %v59, %v60
    %v63 = vstv %s39
    %v64 = vmul.f32 %v61, %v63
    %v65 = vmul.f32 %v62, %v63
    %66 = vst [vmem:[#allocation7] sm:$0xff] %v64
    %67 = vst [vmem:[#allocation7 + $0x8] sm:$0xff] %v65
    // Predicated region
    $region18: #{tpu_custom_call.1} parent=1 // pred_check
      _
    $region19: #{tpu_custom_call.1} parent=1 // pred_check_branch
      %69 = sbr.rel (0) target = $region21
    $region20: #{tpu_custom_call.1} parent=1 // pred_region
      %s71 = ssub.s32 256, 256
      %72 = vsyncadd [#allocation4], %s71
      %s74 = sshll.u32 [#allocation7], 4
      %s75 = int_to_ptr.vmem [resolvable:$true] %s74
      %77 = dma.vmem_to_hbm [thread:$0]  %s75, 256, %s2, [#allocation4]
    $region21: #{tpu_custom_call.1} parent=1 // pred_fallthru
      _
    // Predicated region
    $region22: #{tpu_custom_call.1} parent=1 // pred_check
      _
    $region23: #{tpu_custom_call.1} parent=1 // pred_check_branch
      %79 = sbr.rel (0) target = $region25
    $region24: #{tpu_custom_call.1} parent=1 // pred_region
      %80 = dma.done [#allocation4], 256
    $region25: #{tpu_custom_call.1} parent=1 // pred_fallthru
      _
    %81 = vsyncpa [#allocation3], 1
    %82 = vsyncpa [#allocation4], 1
    %83 = vsyncpa [#allocation5], 1

</llo_original>
